<compile_context>
chip_gen: v7x
topology: tpu7x:2x2x1
jax: 0.10.0
libtpu: 0.0.40
codegen_flags: <defaults>
</compile_context>

<pallas_src>
import jax
import jax.numpy as jnp
import numpy as np
from jax.experimental import pallas as pl
from jax.experimental.pallas import tpu as pltpu

_BN_EPS = 1e-5


def _round_up(x, m):
    return ((x + m - 1) // m) * m


def _max_encoder_kernel(x_ref, w1_ref, b1_ref, w2_ref, b2_ref, w3_ref, b3_ref,
                        out_ref, max_acc):
    """x_ref: (TB, TL, E_pad) bf16 embedded tokens (seq padding filled with -inf)
    w*_ref: (in_pad, H_pad) bf16  BN-folded linear weights
    b*_ref: (1, H_pad) f32        BN-folded biases
    out_ref: (TB, H_pad) f32
    max_acc: (TB, E_pad) f32      running max over sequence tiles
    """
    l = pl.program_id(1)

    @pl.when(l == 0)
    def _init():
        max_acc[...] = jnp.full_like(max_acc, -jnp.inf)

    # Running max over this sequence tile (elementwise math kept in f32 for v5e).
    blk = x_ref[...].astype(jnp.float32)                       # (TB, TL, E_pad)
    max_acc[...] = jnp.maximum(max_acc[...], jnp.max(blk, axis=1))

    @pl.when(l == pl.num_programs(1) - 1)
    def _finish():
        def bn_linear_relu(h, w_ref, b_ref):
            y = jnp.dot(h.astype(jnp.bfloat16), w_ref[...],
                        preferred_element_type=jnp.float32) + b_ref[...]
            # TODO(synk): Dropout is stochastic/training-only; identity in eval mode.
            return jnp.maximum(y, 0.0)

        h = max_acc[...]                                        # (TB, E_pad) f32
        h = bn_linear_relu(h, w1_ref, b1_ref)
        h = bn_linear_relu(h, w2_ref, b2_ref)
        h = bn_linear_relu(h, w3_ref, b3_ref)
        out_ref[...] = h.astype(out_ref.dtype)


def max_encoder_forward(x_ids, params, *, b_tile=None, l_tile=None):
    table = params['embedding']                                 # (vocab+1, E)
    B, L = x_ids.shape
    E = table.shape[1]
    H = params['fc0_w'].shape[0]                                # enc_dim (= hidden_dim)

    E_pad = _round_up(E, 128)
    H_pad = _round_up(H, 128)
    TB = b_tile if b_tile is not None else min(_round_up(B, 8), 256)
    TL = l_tile if l_tile is not None else min(_round_up(L, 8), 512)
    B_pad = _round_up(B, TB)
    L_pad = _round_up(L, TL)

    # ---- glue: embedding gather + lane/sublane padding ----
    # TODO(synk): at production B*L, move the gather in-kernel (ids via scalar prefetch /
    # DMA row-gather) so the (B, L, E) activation never round-trips through HBM.
    emb = jnp.take(table, x_ids, axis=0)                                      # (B, L, E) f32
    emb = jnp.pad(emb, ((0, 0), (0, L_pad - L), (0, 0)),
                  constant_values=-jnp.inf)                                   # seq pad ignored by max
    emb = jnp.pad(emb, ((0, 0), (0, 0), (0, E_pad - E)))                      # lane pad (zeros)
    emb = jnp.pad(emb, ((0, B_pad - B), (0, 0), (0, 0)))                      # batch pad (zeros)
    emb = emb.astype(jnp.bfloat16)                                            # halve DMA bytes

    # ---- fold eval-mode BatchNorm1d into the following Linear; pad lane-dense ----
    def fold_bn_linear(i, in_dim, in_pad):
        scale = params[f'bn{i}_gamma'] / jnp.sqrt(params[f'bn{i}_var'] + _BN_EPS)
        shift = params[f'bn{i}_beta'] - params[f'bn{i}_mean'] * scale
        wt = params[f'fc{i}_w'].T                                             # (in, H)
        w_f = wt * scale[:, None]
        b_f = params[f'fc{i}_b'] + shift @ wt
        w_f = jnp.pad(w_f, ((0, in_pad - in_dim), (0, H_pad - H)))
        b_f = jnp.pad(b_f, (0, H_pad - H)).reshape(1, H_pad)
        return w_f.astype(jnp.bfloat16), b_f.astype(jnp.float32)

    w1, b1 = fold_bn_linear(0, E, E_pad)
    w2, b2 = fold_bn_linear(1, H, H_pad)
    w3, b3 = fold_bn_linear(2, H, H_pad)

    grid = (B_pad // TB, L_pad // TL)
    flops = 2 * B_pad * (E_pad * H_pad + 2 * H_pad * H_pad)
    bytes_accessed = (int(emb.size) * 2
                      + (int(w1.size) + int(w2.size) + int(w3.size)) * 2
                      + (int(b1.size) + int(b2.size) + int(b3.size)) * 4
                      + B_pad * H_pad * 4)

    out = pl.pallas_call(
        _max_encoder_kernel,
        out_shape=jax.ShapeDtypeStruct((B_pad, H_pad), jnp.float32),
        grid_spec=pltpu.PrefetchScalarGridSpec(
            num_scalar_prefetch=0,
            grid=grid,
            in_specs=[
                pl.BlockSpec((TB, TL, E_pad), lambda b, l: (b, l, 0)),
                pl.BlockSpec((E_pad, H_pad), lambda b, l: (0, 0)),
                pl.BlockSpec((1, H_pad), lambda b, l: (0, 0)),
                pl.BlockSpec((H_pad, H_pad), lambda b, l: (0, 0)),
                pl.BlockSpec((1, H_pad), lambda b, l: (0, 0)),
                pl.BlockSpec((H_pad, H_pad), lambda b, l: (0, 0)),
                pl.BlockSpec((1, H_pad), lambda b, l: (0, 0)),
            ],
            out_specs=pl.BlockSpec((TB, H_pad), lambda b, l: (b, 0)),
            scratch_shapes=[pltpu.VMEM((TB, E_pad), jnp.float32)],
        ),
        compiler_params=pltpu.CompilerParams(
            dimension_semantics=("parallel", "arbitrary"),
            vmem_limit_bytes=32 * 1024 * 1024,   # safe on v7x's 64 MiB physical VMEM
        ),
        cost_estimate=pl.CostEstimate(
            flops=int(flops), transcendentals=0, bytes_accessed=int(bytes_accessed)),
    )(emb, w1, b1, w2, b2, w3, b3)

    return out[:B, :H]


def reference_forward(x_ids, params):
    """Pure-JAX reference mirroring the PyTorch forward in eval mode."""
    emb = jnp.take(params['embedding'], x_ids, axis=0)          # (B, L, E)
    h = jnp.max(emb, axis=1)                                    # torch.max(h, dim=1).values
    for i in range(3):
        h = ((h - params[f'bn{i}_mean'])
             / jnp.sqrt(params[f'bn{i}_var'] + _BN_EPS)
             * params[f'bn{i}_gamma'] + params[f'bn{i}_beta'])  # BatchNorm1d (eval)
        h = h @ params[f'fc{i}_w'].T + params[f'fc{i}_b']       # Linear
        h = jnp.maximum(h, 0.0)                                 # ReLU; Dropout = identity
    return h


def make_params(key, vocab_size, embed_dim, hidden_dim):
    ks = jax.random.split(key, 32)
    p = {}
    # nn.Embedding(vocab_size+1, embed_dim, padding_idx=0), normal(0, 0.01) init.
    emb = 0.01 * jax.random.normal(ks[0], (vocab_size + 1, embed_dim), jnp.float32)
    p['embedding'] = emb.at[0].set(0.0)
    layer_dims = [(embed_dim, hidden_dim), (hidden_dim, hidden_dim), (hidden_dim, hidden_dim)]
    for i, (din, dout) in enumerate(layer_dims):
        bound = 1.0 / np.sqrt(din)
        p[f'fc{i}_w'] = jax.random.uniform(ks[1 + 6 * i], (dout, din), jnp.float32, -bound, bound)
        p[f'fc{i}_b'] = jax.random.uniform(ks[2 + 6 * i], (dout,), jnp.float32, -bound, bound)
        p[f'bn{i}_gamma'] = 1.0 + 0.1 * jax.random.normal(ks[3 + 6 * i], (din,), jnp.float32)
        p[f'bn{i}_beta'] = 0.1 * jax.random.normal(ks[4 + 6 * i], (din,), jnp.float32)
        p[f'bn{i}_mean'] = 0.01 * jax.random.normal(ks[5 + 6 * i], (din,), jnp.float32)
        p[f'bn{i}_var'] = jax.random.uniform(ks[6 + 6 * i], (din,), jnp.float32, 0.5, 1.5)
    return p


if __name__ == "__main__":
    vocab_size = 20
    embed_dim = 32        # padded to 128 lanes inside the wrapper
    hidden_dim = 48       # enc_dim, padded to 128 lanes
    B, L = 10, 24         # exercises 2 batch tiles (TB=8) and 3 sequence tiles (TL=8)

    key = jax.random.PRNGKey(0)
    k_ids, k_params = jax.random.split(key)
    params = make_params(k_params, vocab_size, embed_dim, hidden_dim)
    # token ids in [0, vocab_size]; include 0 (padding) tokens too
    x_ids = jax.random.randint(k_ids, (B, L), 0, vocab_size + 1, dtype=jnp.int32)

    out = max_encoder_forward(x_ids, params, b_tile=8, l_tile=8)
    out = jax.block_until_ready(out)

    ref = jax.block_until_ready(reference_forward(x_ids, params))
    # bf16 activations/weights feed the MXU (f32 accumulate) -> looser tolerance than pure f32.
    np.testing.assert_allclose(np.asarray(out), np.asarray(ref), rtol=5e-2, atol=1e-2)

    print("KERNEL_OK")
</pallas_src>

<mosaic_0001>
module attributes {stable_mosaic.version = 11 : i64} {
  func.func @_max_encoder_kernel(%arg0: i32, %arg1: i32, %arg2: memref<8x8x128xbf16, #tpu.memory_space<vmem>>, %arg3: memref<128x128xbf16, #tpu.memory_space<vmem>>, %arg4: memref<1x128xf32, #tpu.memory_space<vmem>>, %arg5: memref<128x128xbf16, #tpu.memory_space<vmem>>, %arg6: memref<1x128xf32, #tpu.memory_space<vmem>>, %arg7: memref<128x128xbf16, #tpu.memory_space<vmem>>, %arg8: memref<1x128xf32, #tpu.memory_space<vmem>>, %arg9: memref<8x128xf32, #tpu.memory_space<vmem>>, %arg10: memref<8x128xf32, #tpu.memory_space<vmem>>) attributes {dimension_semantics = [#tpu.dimension_semantics<parallel>, #tpu.dimension_semantics<arbitrary>], iteration_bounds = array<i64: 2, 3>, scalar_prefetch = 0 : i64, scratch_operands = 1 : i64, tpu.core_type = #tpu.core_type<tc>, window_params = [{transform_indices = @transform_0, window_bounds = array<i64: 8, 8, 128>}, {pipeline_mode = #tpu.pipeline_mode<synchronous>, transform_indices = @transform_1, window_bounds = array<i64: 128, 128>}, {pipeline_mode = #tpu.pipeline_mode<synchronous>, transform_indices = @transform_2, window_bounds = array<i64: 1, 128>}, {pipeline_mode = #tpu.pipeline_mode<synchronous>, transform_indices = @transform_3, window_bounds = array<i64: 128, 128>}, {pipeline_mode = #tpu.pipeline_mode<synchronous>, transform_indices = @transform_4, window_bounds = array<i64: 1, 128>}, {pipeline_mode = #tpu.pipeline_mode<synchronous>, transform_indices = @transform_5, window_bounds = array<i64: 128, 128>}, {pipeline_mode = #tpu.pipeline_mode<synchronous>, transform_indices = @transform_6, window_bounds = array<i64: 1, 128>}, {transform_indices = @transform_7, window_bounds = array<i64: 8, 128>}]} {
    %c0_i32 = arith.constant 0 : i32
    %0 = arith.cmpi eq, %arg1, %c0_i32 : i32
    %1 = arith.extui %0 : i1 to i32
    %c0_i32_0 = arith.constant 0 : i32
    %2 = arith.cmpi ne, %1, %c0_i32_0 : i32
    scf.if %2 {
      %cst_8 = arith.constant 0xFF800000 : f32
      %12 = vector.broadcast %cst_8 : f32 to vector<8x128xf32>
      %c0_9 = arith.constant 0 : index
      %c0_10 = arith.constant 0 : index
      %13 = vector.load %arg10[%c0_9, %c0_10] : memref<8x128xf32, #tpu.memory_space<vmem>>, vector<8x128xf32>
      tpu.vector_store %arg10[%c0_9, %c0_10], %12 {strides = array<i32>} : memref<8x128xf32, #tpu.memory_space<vmem>>, vector<8x128xf32>,
    } else {
    }
    %c0 = arith.constant 0 : index
    %c0_1 = arith.constant 0 : index
    %c0_2 = arith.constant 0 : index
    %3 = vector.load %arg2[%c0, %c0_1, %c0_2] : memref<8x8x128xbf16, #tpu.memory_space<vmem>>, vector<8x8x128xbf16>
    %4 = arith.extf %3 : vector<8x8x128xbf16> to vector<8x8x128xf32>
    %c0_3 = arith.constant 0 : index
    %c0_4 = arith.constant 0 : index
    %5 = vector.load %arg10[%c0_3, %c0_4] : memref<8x128xf32, #tpu.memory_space<vmem>>, vector<8x128xf32>
    %cst = arith.constant dense<0xFF800000> : vector<8x128xf32>
    %6 = vector.multi_reduction <maximumf>, %4, %cst [1] : vector<8x8x128xf32> to vector<8x128xf32>
    %7 = arith.maximumf %5, %6 : vector<8x128xf32>
    %c0_5 = arith.constant 0 : index
    %c0_6 = arith.constant 0 : index
    %8 = vector.load %arg10[%c0_5, %c0_6] : memref<8x128xf32, #tpu.memory_space<vmem>>, vector<8x128xf32>
    tpu.vector_store %arg10[%c0_5, %c0_6], %7 {strides = array<i32>} : memref<8x128xf32, #tpu.memory_space<vmem>>, vector<8x128xf32>,
    %c2_i32 = arith.constant 2 : i32
    %9 = arith.cmpi eq, %arg1, %c2_i32 : i32
    %10 = arith.extui %9 : i1 to i32
    %c0_i32_7 = arith.constant 0 : i32
    %11 = arith.cmpi ne, %10, %c0_i32_7 : i32
    scf.if %11 {
      %c0_8 = arith.constant 0 : index
      %c0_9 = arith.constant 0 : index
      %12 = vector.load %arg10[%c0_8, %c0_9] : memref<8x128xf32, #tpu.memory_space<vmem>>, vector<8x128xf32>
      %13 = arith.truncf %12 : vector<8x128xf32> to vector<8x128xbf16>
      %c0_10 = arith.constant 0 : index
      %c0_11 = arith.constant 0 : index
      %14 = vector.load %arg3[%c0_10, %c0_11] : memref<128x128xbf16, #tpu.memory_space<vmem>>, vector<128x128xbf16>
      %cst_12 = arith.constant dense<0.000000e+00> : vector<8x128xf32>
      %15 = tpu.matmul %13, %14, %cst_12 {dimension_numbers = #tpu.dot_dimension_numbers<[1], [0], [0], [1], [0, 0, 1, 1], [], []>} : vector<8x128xbf16>, vector<128x128xbf16>, vector<8x128xf32> -> vector<8x128xf32>
      %c0_13 = arith.constant 0 : index
      %c0_14 = arith.constant 0 : index
      %16 = vector.load %arg4[%c0_13, %c0_14] : memref<1x128xf32, #tpu.memory_space<vmem>>, vector<1x128xf32>
      %17 = vector.broadcast %16 : vector<1x128xf32> to vector<8x128xf32>
      %18 = arith.addf %15, %17 : vector<8x128xf32>
      %cst_15 = arith.constant 0.000000e+00 : f32
      %19 = vector.broadcast %cst_15 : f32 to vector<8x128xf32>
      %20 = arith.maximumf %18, %19 : vector<8x128xf32>
      %21 = arith.truncf %20 : vector<8x128xf32> to vector<8x128xbf16>
      %c0_16 = arith.constant 0 : index
      %c0_17 = arith.constant 0 : index
      %22 = vector.load %arg5[%c0_16, %c0_17] : memref<128x128xbf16, #tpu.memory_space<vmem>>, vector<128x128xbf16>
      %cst_18 = arith.constant dense<0.000000e+00> : vector<8x128xf32>
      %23 = tpu.matmul %21, %22, %cst_18 {dimension_numbers = #tpu.dot_dimension_numbers<[1], [0], [0], [1], [0, 0, 1, 1], [], []>} : vector<8x128xbf16>, vector<128x128xbf16>, vector<8x128xf32> -> vector<8x128xf32>
      %c0_19 = arith.constant 0 : index
      %c0_20 = arith.constant 0 : index
      %24 = vector.load %arg6[%c0_19, %c0_20] : memref<1x128xf32, #tpu.memory_space<vmem>>, vector<1x128xf32>
      %25 = vector.broadcast %24 : vector<1x128xf32> to vector<8x128xf32>
      %26 = arith.addf %23, %25 : vector<8x128xf32>
      %cst_21 = arith.constant 0.000000e+00 : f32
      %27 = vector.broadcast %cst_21 : f32 to vector<8x128xf32>
      %28 = arith.maximumf %26, %27 : vector<8x128xf32>
      %29 = arith.truncf %28 : vector<8x128xf32> to vector<8x128xbf16>
      %c0_22 = arith.constant 0 : index
      %c0_23 = arith.constant 0 : index
      %30 = vector.load %arg7[%c0_22, %c0_23] : memref<128x128xbf16, #tpu.memory_space<vmem>>, vector<128x128xbf16>
      %cst_24 = arith.constant dense<0.000000e+00> : vector<8x128xf32>
      %31 = tpu.matmul %29, %30, %cst_24 {dimension_numbers = #tpu.dot_dimension_numbers<[1], [0], [0], [1], [0, 0, 1, 1], [], []>} : vector<8x128xbf16>, vector<128x128xbf16>, vector<8x128xf32> -> vector<8x128xf32>
      %c0_25 = arith.constant 0 : index
      %c0_26 = arith.constant 0 : index
      %32 = vector.load %arg8[%c0_25, %c0_26] : memref<1x128xf32, #tpu.memory_space<vmem>>, vector<1x128xf32>
      %33 = vector.broadcast %32 : vector<1x128xf32> to vector<8x128xf32>
      %34 = arith.addf %31, %33 : vector<8x128xf32>
      %cst_27 = arith.constant 0.000000e+00 : f32
      %35 = vector.broadcast %cst_27 : f32 to vector<8x128xf32>
      %36 = arith.maximumf %34, %35 : vector<8x128xf32>
      %c0_28 = arith.constant 0 : index
      %c0_29 = arith.constant 0 : index
      %37 = vector.load %arg9[%c0_28, %c0_29] : memref<8x128xf32, #tpu.memory_space<vmem>>, vector<8x128xf32>
      tpu.vector_store %arg9[%c0_28, %c0_29], %36 {strides = array<i32>} : memref<8x128xf32, #tpu.memory_space<vmem>>, vector<8x128xf32>,
    } else {
    }
    return
  }
  func.func @transform_0(%arg0: i32, %arg1: i32) -> (i32, i32, i32) {
    %c0_i32 = arith.constant 0 : i32
    %c0_i32_0 = arith.constant 0 : i32
    return %arg0, %arg1, %c0_i32 : i32, i32, i32
  }
  func.func @transform_1(%arg0: i32, %arg1: i32) -> (i32, i32) {
    %c0_i32 = arith.constant 0 : i32
    %c0_i32_0 = arith.constant 0 : i32
    %c0_i32_1 = arith.constant 0 : i32
    return %c0_i32, %c0_i32_0 : i32, i32
  }
  func.func @transform_2(%arg0: i32, %arg1: i32) -> (i32, i32) {
    %c0_i32 = arith.constant 0 : i32
    %c0_i32_0 = arith.constant 0 : i32
    %c0_i32_1 = arith.constant 0 : i32
    return %c0_i32, %c0_i32_0 : i32, i32
  }
  func.func @transform_3(%arg0: i32, %arg1: i32) -> (i32, i32) {
    %c0_i32 = arith.constant 0 : i32
    %c0_i32_0 = arith.constant 0 : i32
    %c0_i32_1 = arith.constant 0 : i32
    return %c0_i32, %c0_i32_0 : i32, i32
  }
  func.func @transform_4(%arg0: i32, %arg1: i32) -> (i32, i32) {
    %c0_i32 = arith.constant 0 : i32
    %c0_i32_0 = arith.constant 0 : i32
    %c0_i32_1 = arith.constant 0 : i32
    return %c0_i32, %c0_i32_0 : i32, i32
  }
  func.func @transform_5(%arg0: i32, %arg1: i32) -> (i32, i32) {
    %c0_i32 = arith.constant 0 : i32
    %c0_i32_0 = arith.constant 0 : i32
    %c0_i32_1 = arith.constant 0 : i32
    return %c0_i32, %c0_i32_0 : i32, i32
  }
  func.func @transform_6(%arg0: i32, %arg1: i32) -> (i32, i32) {
    %c0_i32 = arith.constant 0 : i32
    %c0_i32_0 = arith.constant 0 : i32
    %c0_i32_1 = arith.constant 0 : i32
    return %c0_i32, %c0_i32_0 : i32, i32
  }
  func.func @transform_7(%arg0: i32, %arg1: i32) -> (i32, i32) {
    %c0_i32 = arith.constant 0 : i32
    %c0_i32_0 = arith.constant 0 : i32
    return %arg0, %c0_i32 : i32, i32
  }
}

</mosaic_0001>

<llo_original>
// kernel: tpu_custom_call.1
$region0: #{tpu_custom_call.1}
  #allocation0 [shape = 'u32[]', space=smem, size = 0x4, offset = 0x4, fixed_abs, tag = 'smem constant byte address 0x4 - core index']
  #allocation1 [shape = 'u32[144,128]{1,0:T(1,128)}', space=vmem, size = 0x12000, scoped, tag = 'internal scratch']
  #allocation2 [shape = 'f32[8,128]{1,0:T(8,128)}', space=vmem, size = 0x1000, scoped, tag = 'scratch operand']
  %s0 = inlined_call_operand.hbm [shape: bf16[16,24,128], index: 0, kind: input, shape index: {}]
  %s1 = inlined_call_operand.hbm [shape: bf16[128,128], index: 1, kind: input, shape index: {}]
  %s2 = inlined_call_operand.vmem [shape: f32[1,128], index: 2, kind: input, shape index: {}]
  %s3 = inlined_call_operand.hbm [shape: bf16[128,128], index: 3, kind: input, shape index: {}]
  %s4 = inlined_call_operand.vmem [shape: f32[1,128], index: 4, kind: input, shape index: {}]
  %s5 = inlined_call_operand.hbm [shape: bf16[128,128], index: 5, kind: input, shape index: {}]
  %s6 = inlined_call_operand.vmem [shape: f32[1,128], index: 6, kind: input, shape index: {}]
  %s7 = inlined_call_operand.hbm [shape: f32[16,128], index: 7, kind: output, shape index: {}]
  %s8 = sld [smem:[#allocation0]]
  $region85: #{tpu_custom_call.1} parent=0
    _
  %s10 = ssub.s32 1, %s8
  %s11 = scalar_select 0, %s10, %s8
  $region1: #{tpu_custom_call.1} parent=0
    #allocation3 [shape = 'u8[32768]{0}', space=vmem, size = 0x8000, scoped, tag = 'input window, operand 0']
    #allocation4 [shape = 's32[2]{0}', space=sflag, size = 0x8, scoped, tag = 'scoped memory for tpu_custom_call.1']
    #allocation5 [shape = 's32[2]{0}', space=sflag, size = 0x8, scoped, tag = 'scoped memory for tpu_custom_call.1']
    #allocation6 [shape = 'u8[32768]{0}', space=vmem, size = 0x8000, scoped, tag = 'input window, operand 1, single buffered']
    #allocation7 [shape = 's32[1]{0}', space=sflag, size = 0x4, scoped, tag = 'scoped memory for tpu_custom_call.1']
    #allocation8 [shape = 'u8[32768]{0}', space=vmem, size = 0x8000, scoped, tag = 'input window, operand 3, single buffered']
    #allocation9 [shape = 'u8[32768]{0}', space=vmem, size = 0x8000, scoped, tag = 'input window, operand 5, single buffered']
    #allocation10 [shape = 's32[1]{0}', space=sflag, size = 0x4, scoped, tag = 'scoped memory for tpu_custom_call.1']
    #allocation11 [shape = 'u8[8192]{0}', space=vmem, size = 0x2000, scoped, tag = 'output window, operand 0']
    %12 = vsyncpa [#allocation4], 0
    %s13 = scalar_lea.sflag [#allocation4], 1
    %14 = vsyncpa %s13, 0
    %15 = vsyncpa [#allocation7], 0
    %16 = vsyncpa [#allocation10], 0
    %17 = vsyncpa [#allocation5], 0
    %s18 = scalar_lea.sflag [#allocation5], 1
    %19 = vsyncpa %s18, 0
    loop: start=0, step=1, limit=8
    $region2: #{tpu_custom_call.1} parent=1 // loop_pre_header
      _
    $region3: #{tpu_custom_call.1} parent=1 // loop_header
      %s21 = sphi 0, %s25
      %p22 = scmp.ge.s32.totalorder %s21, 8
      %s28 = sphi 0, %s40
      %s29 = sphi 0, %s36
      %s30 = sphi 0, %s28
      %s31 = sphi 0, %s29
      %s32 = sphi 0, %s30
      %s33 = sphi 0, %s31
      %s45 = sphi 0, %s47
      %s48 = sphi 0, %s45
      %s49 = sphi 0, %s48
      %s65 = sphi 0, %s49
      %s69 = sphi 0, %s69
      %s71 = sphi 0, %s69
      %s72 = sphi 0, %s71
      %s86 = sphi 0, %s72
      %s90 = sphi 0, %s90
      %s92 = sphi 0, %s90
      %s93 = sphi 0, %s92
      %s107 = sphi 0, %s93
      %s111 = sphi 0, %s111
      %s113 = sphi 0, %s111
      %s114 = sphi 0, %s113
      %s128 = sphi 0, %s114
      %s132 = sphi 0, %s132
      %s134 = sphi 0, %s132
      %s135 = sphi 0, %s134
      %s149 = sphi 0, %s135
      %s153 = sphi 0, %s153
      %s155 = sphi 0, %s153
      %s156 = sphi 0, %s155
      %s170 = sphi 0, %s156
      %s174 = sphi 0, %s174
      %s176 = sphi 0, %s174
      %s177 = sphi 0, %s176
      %s191 = sphi 0, %s177
      %s197 = sphi 0, %s199
      %s200 = sphi 0, %s197
      %s201 = sphi 0, %s200
      %s217 = sphi 0, %s201
    $region4: #{tpu_custom_call.1} parent=1 // loop_header_branch
      %24 = sbr.rel (%p22) target = $region8
    $region5: #{tpu_custom_call.1} parent=1 // loop_body
      %s26 = ssub.s32 %s21, 1
      %s27 = ssub.s32 %s21, 2
      %s34 = sadd.s32 1, %s29
      %p35 = scmp.ge.s32.totalorder %s34, 3
      %s36 = scalar_select %p35, 0, %s34
      %s37 = sadd.s32 1, %s28
      %s38 = scalar_select %p35, %s37, %s28
      %p39 = scmp.ge.s32.totalorder %s38, 2
      %s40 = scalar_select %p39, 0, %s38
      %s41 = ssub.s32 %s28, %s40
      %s42 = ssub.s32 %s29, %s36
      %s43 = sor.u32 %s41, %s42
      %p44 = scmp.eq.s32.totalorder %s43, 0
      %s46 = sadd.s32 %s45, 1
      %s47 = scalar_select %p44, %s45, %s46
      %p50 = pneg %p44
      %p51 = scmp.eq.s32.totalorder %s21, 5
      %p52 = por %p50, %p51
      %p53 = scmp.ne.s32.totalorder %s45, %s48
      %p54 = scmp.eq.s32.totalorder %s21, 0
      %p55 = por %p53, %p54
      %p56 = scmp.ne.s32.totalorder %s45, %s48
      %p57 = scmp.eq.s32.totalorder %s26, 5
      %p58 = por %p56, %p57
      %p59 = scmp.ne.s32.totalorder %s48, %s49
      %p60 = scmp.eq.s32.totalorder %s26, 0
      %p61 = por %p59, %p60
      %p62 = scmp.ne.s32.totalorder %s48, %s49
      %p63 = scmp.eq.s32.totalorder %s27, 5
      %p64 = por %p62, %p63
      %p66 = scmp.ne.s32.totalorder %s49, %s65
      %p67 = scmp.eq.s32.totalorder %s27, 0
      %p68 = por %p66, %p67
      %s70 = sadd.s32 %s69, 1
      %p73 = scmp.eq.s32.totalorder %s21, 5
      %p74 = scmp.ne.s32.totalorder %s69, %s71
      %p75 = scmp.eq.s32.totalorder %s21, 0
      %p76 = por %p74, %p75
      %p77 = scmp.ne.s32.totalorder %s69, %s71
      %p78 = scmp.eq.s32.totalorder %s26, 5
      %p79 = por %p77, %p78
      %p80 = scmp.ne.s32.totalorder %s71, %s72
      %p81 = scmp.eq.s32.totalorder %s26, 0
      %p82 = por %p80, %p81
      %p83 = scmp.ne.s32.totalorder %s71, %s72
      %p84 = scmp.eq.s32.totalorder %s27, 5
      %p85 = por %p83, %p84
      %p87 = scmp.ne.s32.totalorder %s72, %s86
      %p88 = scmp.eq.s32.totalorder %s27, 0
      %p89 = por %p87, %p88
      %s91 = sadd.s32 %s90, 1
      %p94 = scmp.eq.s32.totalorder %s21, 5
      %p95 = scmp.ne.s32.totalorder %s90, %s92
      %p96 = scmp.eq.s32.totalorder %s21, 0
      %p97 = por %p95, %p96
      %p98 = scmp.ne.s32.totalorder %s90, %s92
      %p99 = scmp.eq.s32.totalorder %s26, 5
      %p100 = por %p98, %p99
      %p101 = scmp.ne.s32.totalorder %s92, %s93
      %p102 = scmp.eq.s32.totalorder %s26, 0
      %p103 = por %p101, %p102
      %p104 = scmp.ne.s32.totalorder %s92, %s93
      %p105 = scmp.eq.s32.totalorder %s27, 5
      %p106 = por %p104, %p105
      %p108 = scmp.ne.s32.totalorder %s93, %s107
      %p109 = scmp.eq.s32.totalorder %s27, 0
      %p110 = por %p108, %p109
      %s112 = sadd.s32 %s111, 1
      %p115 = scmp.eq.s32.totalorder %s21, 5
      %p116 = scmp.ne.s32.totalorder %s111, %s113
      %p117 = scmp.eq.s32.totalorder %s21, 0
      %p118 = por %p116, %p117
      %p119 = scmp.ne.s32.totalorder %s111, %s113
      %p120 = scmp.eq.s32.totalorder %s26, 5
      %p121 = por %p119, %p120
      %p122 = scmp.ne.s32.totalorder %s113, %s114
      %p123 = scmp.eq.s32.totalorder %s26, 0
      %p124 = por %p122, %p123
      %p125 = scmp.ne.s32.totalorder %s113, %s114
      %p126 = scmp.eq.s32.totalorder %s27, 5
      %p127 = por %p125, %p126
      %p129 = scmp.ne.s32.totalorder %s114, %s128
      %p130 = scmp.eq.s32.totalorder %s27, 0
      %p131 = por %p129, %p130
      %s133 = sadd.s32 %s132, 1
      %p136 = scmp.eq.s32.totalorder %s21, 5
      %p137 = scmp.ne.s32.totalorder %s132, %s134
      %p138 = scmp.eq.s32.totalorder %s21, 0
      %p139 = por %p137, %p138
      %p140 = scmp.ne.s32.totalorder %s132, %s134
      %p141 = scmp.eq.s32.totalorder %s26, 5
      %p142 = por %p140, %p141
      %p143 = scmp.ne.s32.totalorder %s134, %s135
      %p144 = scmp.eq.s32.totalorder %s26, 0
      %p145 = por %p143, %p144
      %p146 = scmp.ne.s32.totalorder %s134, %s135
      %p147 = scmp.eq.s32.totalorder %s27, 5
      %p148 = por %p146, %p147
      %p150 = scmp.ne.s32.totalorder %s135, %s149
      %p151 = scmp.eq.s32.totalorder %s27, 0
      %p152 = por %p150, %p151
      %s154 = sadd.s32 %s153, 1
      %p157 = scmp.eq.s32.totalorder %s21, 5
      %p158 = scmp.ne.s32.totalorder %s153, %s155
      %p159 = scmp.eq.s32.totalorder %s21, 0
      %p160 = por %p158, %p159
      %p161 = scmp.ne.s32.totalorder %s153, %s155
      %p162 = scmp.eq.s32.totalorder %s26, 5
      %p163 = por %p161, %p162
      %p164 = scmp.ne.s32.totalorder %s155, %s156
      %p165 = scmp.eq.s32.totalorder %s26, 0
      %p166 = por %p164, %p165
      %p167 = scmp.ne.s32.totalorder %s155, %s156
      %p168 = scmp.eq.s32.totalorder %s27, 5
      %p169 = por %p167, %p168
      %p171 = scmp.ne.s32.totalorder %s156, %s170
      %p172 = scmp.eq.s32.totalorder %s27, 0
      %p173 = por %p171, %p172
      %s175 = sadd.s32 %s174, 1
      %p178 = scmp.eq.s32.totalorder %s21, 5
      %p179 = scmp.ne.s32.totalorder %s174, %s176
      %p180 = scmp.eq.s32.totalorder %s21, 0
      %p181 = por %p179, %p180
      %p182 = scmp.ne.s32.totalorder %s174, %s176
      %p183 = scmp.eq.s32.totalorder %s26, 5
      %p184 = por %p182, %p183
      %p185 = scmp.ne.s32.totalorder %s176, %s177
      %p186 = scmp.eq.s32.totalorder %s26, 0
      %p187 = por %p185, %p186
      %p188 = scmp.ne.s32.totalorder %s176, %s177
      %p189 = scmp.eq.s32.totalorder %s27, 5
      %p190 = por %p188, %p189
      %p192 = scmp.ne.s32.totalorder %s177, %s191
      %p193 = scmp.eq.s32.totalorder %s27, 0
      %p194 = por %p192, %p193
      %s195 = ssub.s32 %s28, %s40
      %p196 = scmp.eq.s32.totalorder %s195, 0
      %s198 = sadd.s32 %s197, 1
      %s199 = scalar_select %p196, %s197, %s198
      %p202 = pneg %p196
      %p203 = scmp.eq.s32.totalorder %s21, 5
      %p204 = por %p202, %p203
      %p205 = scmp.ne.s32.totalorder %s197, %s200
      %p206 = scmp.eq.s32.totalorder %s21, 0
      %p207 = por %p205, %p206
      %p208 = scmp.ne.s32.totalorder %s197, %s200
      %p209 = scmp.eq.s32.totalorder %s26, 5
      %p210 = por %p208, %p209
      %p211 = scmp.ne.s32.totalorder %s200, %s201
      %p212 = scmp.eq.s32.totalorder %s26, 0
      %p213 = por %p211, %p212
      %p214 = scmp.ne.s32.totalorder %s200, %s201
      %p215 = scmp.eq.s32.totalorder %s27, 5
      %p216 = por %p214, %p215
      %p218 = scmp.ne.s32.totalorder %s201, %s217
      %p219 = scmp.eq.s32.totalorder %s27, 0
      %p220 = por %p218, %p219
      %p221 = scmp.le.s32.totalorder 1, %s21
      %p222 = scmp.lt.s32.totalorder %s21, 7
      %p223 = pnand %p221, %p222
      %p224 = pneg %p223
      // Predicated region
      $region9: #{tpu_custom_call.1} parent=5 // pred_check
        _
      $region10: #{tpu_custom_call.1} parent=5 // pred_check_branch
        %226 = sbr.rel (%p223) target = $region12
      $region11: #{tpu_custom_call.1} parent=5 // pred_region
        %s227 = ssub.s32 %s21, 1
        // Predicated region
        $region13: #{tpu_custom_call.1} parent=11 // pred_check
          %p228 = pneg %p82
        $region14: #{tpu_custom_call.1} parent=11 // pred_check_branch
          %230 = sbr.rel (%p228) target = $region16
        $region15: #{tpu_custom_call.1} parent=11 // pred_region
          %s232 = ssub.s32 1024, 1024
          %233 = vsyncadd [#allocation7], %s232
          %s234 = sshll.u32 [#allocation6], 4
          %s235 = int_to_ptr.vmem [resolvable:$true] %s234
          %240 = dma.hbm_to_vmem [thread:$0]  %s1, 1024, %s235, [#allocation7], 64, 64, 4
        $region16: #{tpu_custom_call.1} parent=11 // pred_fallthru
          _
        // Predicated region
        $region17: #{tpu_custom_call.1} parent=11 // pred_check
          %p241 = pneg %p103
        $region18: #{tpu_custom_call.1} parent=11 // pred_check_branch
          %243 = sbr.rel (%p241) target = $region20
        $region19: #{tpu_custom_call.1} parent=11 // pred_region
          _
        $region20: #{tpu_custom_call.1} parent=11 // pred_fallthru
          _
        // Predicated region
        $region21: #{tpu_custom_call.1} parent=11 // pred_check
          %p244 = pneg %p124
        $region22: #{tpu_custom_call.1} parent=11 // pred_check_branch
          %246 = sbr.rel (%p244) target = $region24
        $region23: #{tpu_custom_call.1} parent=11 // pred_region
          %s248 = ssub.s32 1024, 1024
          %249 = vsyncadd [#allocation7], %s248
          %s250 = sshll.u32 [#allocation8], 4
          %s251 = int_to_ptr.vmem [resolvable:$true] %s250
          %256 = dma.hbm_to_vmem [thread:$0]  %s3, 1024, %s251, [#allocation7], 64, 64, 4
        $region24: #{tpu_custom_call.1} parent=11 // pred_fallthru
          _
        // Predicated region
        $region25: #{tpu_custom_call.1} parent=11 // pred_check
          %p257 = pneg %p145
        $region26: #{tpu_custom_call.1} parent=11 // pred_check_branch
          %259 = sbr.rel (%p257) target = $region28
        $region27: #{tpu_custom_call.1} parent=11 // pred_region
          _
        $region28: #{tpu_custom_call.1} parent=11 // pred_fallthru
          _
        // Predicated region
        $region29: #{tpu_custom_call.1} parent=11 // pred_check
          %p260 = pneg %p166
        $region30: #{tpu_custom_call.1} parent=11 // pred_check_branch
          %262 = sbr.rel (%p260) target = $region32
        $region31: #{tpu_custom_call.1} parent=11 // pred_region
          %s264 = ssub.s32 1024, 1024
          %265 = vsyncadd [#allocation10], %s264
          %s266 = sshll.u32 [#allocation9], 4
          %s267 = int_to_ptr.vmem [resolvable:$true] %s266
          %272 = dma.hbm_to_vmem [thread:$0]  %s5, 1024, %s267, [#allocation10], 64, 64, 4
        $region32: #{tpu_custom_call.1} parent=11 // pred_fallthru
          _
        // Predicated region
        $region33: #{tpu_custom_call.1} parent=11 // pred_check
          %p273 = pneg %p187
        $region34: #{tpu_custom_call.1} parent=11 // pred_check_branch
          %275 = sbr.rel (%p273) target = $region36
        $region35: #{tpu_custom_call.1} parent=11 // pred_region
          _
        $region36: #{tpu_custom_call.1} parent=11 // pred_fallthru
          _
      $region12: #{tpu_custom_call.1} parent=5 // pred_fallthru
        _
      %p276 = scmp.lt.s32.totalorder %s21, 6
      // Predicated region
      $region37: #{tpu_custom_call.1} parent=5 // pred_check
        %p277 = pneg %p276
      $region38: #{tpu_custom_call.1} parent=5 // pred_check_branch
        %279 = sbr.rel (%p277) target = $region40
      $region39: #{tpu_custom_call.1} parent=5 // pred_region
        // Predicated region
        $region41: #{tpu_custom_call.1} parent=39 // pred_check
          %p280 = pneg %p55
        $region42: #{tpu_custom_call.1} parent=39 // pred_check_branch
          %282 = sbr.rel (%p280) target = $region44
        $region43: #{tpu_custom_call.1} parent=39 // pred_region
          %s283 = sand.u32 %s45, 1
          %s284 = scalar_lea.sflag [#allocation4], %s283
          %s285 = sand.u32 %s45, 1
          %s286 = smul.addr %s285, 32
          %s287 = scalar_lea.vmem [#allocation3], %s286
          %s288 = smul.u32 8, %s28
          %s290 = ssub.s32 512, 512
          %291 = vsyncadd %s284, %s290
          %s292 = smul.addr %s288, 3
          %s293 = sadd.s32 %s29, %s292
          %s294 = smul.addr %s293, 64
          %s295 = scalar_lea.hbm %s0, %s294
          %s296 = sshll.u32 %s287, 4
          %s297 = int_to_ptr.vmem [resolvable:$true] %s296
          %302 = dma.hbm_to_vmem [thread:$0]  %s295, 512, %s297, %s284, 192, 64, 4
        $region44: #{tpu_custom_call.1} parent=39 // pred_fallthru
          _
      $region40: #{tpu_custom_call.1} parent=5 // pred_fallthru
        _
      %p303 = scmp.le.s32.totalorder 1, %s21
      %p304 = scmp.lt.s32.totalorder %s21, 7
      %p305 = pnand %p303, %p304
      %p306 = pneg %p305
      // Predicated region
      $region45: #{tpu_custom_call.1} parent=5 // pred_check
        _
      $region46: #{tpu_custom_call.1} parent=5 // pred_check_branch
        %308 = sbr.rel (%p305) target = $region48
      $region47: #{tpu_custom_call.1} parent=5 // pred_region
        %s309 = ssub.s32 %s21, 1
        %s310 = sand.u32 %s48, 1
        %s311 = scalar_lea.sflag [#allocation4], %s310
        %s312 = sand.u32 %s48, 1
        %s313 = smul.addr %s312, 32
        %s314 = scalar_lea.vmem [#allocation3], %s313
        // Predicated region
        $region49: #{tpu_custom_call.1} parent=47 // pred_check
          %p315 = pneg %p61
        $region50: #{tpu_custom_call.1} parent=47 // pred_check_branch
          %317 = sbr.rel (%p315) target = $region52
        $region51: #{tpu_custom_call.1} parent=47 // pred_region
          %318 = dma.done %s311, 512
        $region52: #{tpu_custom_call.1} parent=47 // pred_fallthru
          _
        // Predicated region
        $region53: #{tpu_custom_call.1} parent=47 // pred_check
          %p319 = pneg %p82
        $region54: #{tpu_custom_call.1} parent=47 // pred_check_branch
          %321 = sbr.rel (%p319) target = $region56
        $region55: #{tpu_custom_call.1} parent=47 // pred_region
          %322 = dma.done [#allocation7], 1024
        $region56: #{tpu_custom_call.1} parent=47 // pred_fallthru
          _
        // Predicated region
        $region57: #{tpu_custom_call.1} parent=47 // pred_check
          %p323 = pneg %p124
        $region58: #{tpu_custom_call.1} parent=47 // pred_check_branch
          %325 = sbr.rel (%p323) target = $region60
        $region59: #{tpu_custom_call.1} parent=47 // pred_region
          %326 = dma.done [#allocation7], 1024
        $region60: #{tpu_custom_call.1} parent=47 // pred_fallthru
          _
        // Predicated region
        $region61: #{tpu_custom_call.1} parent=47 // pred_check
          %p327 = pneg %p166
        $region62: #{tpu_custom_call.1} parent=47 // pred_check_branch
          %329 = sbr.rel (%p327) target = $region64
        $region63: #{tpu_custom_call.1} parent=47 // pred_region
          %330 = dma.done [#allocation10], 1024
        $region64: #{tpu_custom_call.1} parent=47 // pred_fallthru
          _
        %s331 = sand.u32 %s48, 1
        %s332 = scalar_lea.sflag [#allocation4], %s331
        %s333 = sand.u32 %s48, 1
        %s334 = smul.addr %s333, 32
        %s335 = scalar_lea.vmem [#allocation3], %s334
        %p336 = pneg %p61
        %p337 = pneg %p58
        %p338 = pneg %p82
        %p339 = pneg %p79
        %p340 = pneg %p103
        %p341 = pneg %p100
        %p342 = pneg %p124
        %p343 = pneg %p121
        %p344 = pneg %p145
        %p345 = pneg %p142
        %p346 = pneg %p166
        %p347 = pneg %p163
        %p348 = pneg %p187
        %p349 = pneg %p184
        %p350 = pneg %p213
        %p351 = pneg %p210
        %s352 = sand.u32 %s200, 1
        %s353 = scalar_lea.sflag [#allocation5], %s352
        %s354 = sand.u32 %s200, 1
        %s355 = smul.addr %s354, 8
        %s356 = scalar_lea.vmem [#allocation11], %s355
        %s357 = smul.u32 8, %s30
        %p359 = scmp.eq.s32.totalorder %s31, 0
        // Predicated region
        $region65: #{tpu_custom_call.1} parent=47 // pred_check
          %p360 = pneg %p359
        $region66: #{tpu_custom_call.1} parent=47 // pred_check_branch
          %362 = sbr.rel (%p360) target = $region68
        $region67: #{tpu_custom_call.1} parent=47 // pred_region
          %363 = vst [vmem:[#allocation2] sm:$0xff] -inf
        $region68: #{tpu_custom_call.1} parent=47 // pred_fallthru
          _
        %v364 = vld [vmem:[%s314] sm:$0xf]
        %v365 = vld [vmem:[%s314 + $0x4] sm:$0xf]
        %v366 = vld [vmem:[%s314 + $0x8] sm:$0xf]
        %v367 = vld [vmem:[%s314 + $0xc] sm:$0xf]
        %v368 = vld [vmem:[%s314 + $0x10] sm:$0xf]
        %v369 = vld [vmem:[%s314 + $0x14] sm:$0xf]
        %v370 = vld [vmem:[%s314 + $0x18] sm:$0xf]
        %v371 = vld [vmem:[%s314 + $0x1c] sm:$0xf]
        %v372 = vunpack.c.l.bf16 %v364
        %v373 = vunpack.c.l.bf16 %v365
        %v374 = vunpack.c.l.bf16 %v366
        %v375 = vunpack.c.l.bf16 %v367
        %v376 = vunpack.c.l.bf16 %v368
        %v377 = vunpack.c.l.bf16 %v369
        %v378 = vunpack.c.l.bf16 %v370
        %v379 = vunpack.c.l.bf16 %v371
        %v380 = vld [vmem:[#allocation2] sm:$0xff]
        %v381 = vrot.slane %v372, 4
        %v382 = vmax.f32 %v372, %v381
        %v383 = vrot.slane %v382, 2
        %v384 = vmax.f32 %v382, %v383
        %v385 = vrot.slane %v384, 1
        %v386 = vmax.f32 %v384, %v385
        %v387 = vrot.slane %v373, 4
        %v388 = vmax.f32 %v373, %v387
        %v389 = vrot.slane %v388, 2
        %v390 = vmax.f32 %v388, %v389
        %v391 = vrot.slane %v390, 1
        %v392 = vmax.f32 %v390, %v391
        %v393 = vrot.slane %v374, 4
        %v394 = vmax.f32 %v374, %v393
        %v395 = vrot.slane %v394, 2
        %v396 = vmax.f32 %v394, %v395
        %v397 = vrot.slane %v396, 1
        %v398 = vmax.f32 %v396, %v397
        %v399 = vrot.slane %v375, 4
        %v400 = vmax.f32 %v375, %v399
        %v401 = vrot.slane %v400, 2
        %v402 = vmax.f32 %v400, %v401
        %v403 = vrot.slane %v402, 1
        %v404 = vmax.f32 %v402, %v403
        %v405 = vrot.slane %v376, 4
        %v406 = vmax.f32 %v376, %v405
        %v407 = vrot.slane %v406, 2
        %v408 = vmax.f32 %v406, %v407
        %v409 = vrot.slane %v408, 1
        %v410 = vmax.f32 %v408, %v409
        %v411 = vrot.slane %v377, 4
        %v412 = vmax.f32 %v377, %v411
        %v413 = vrot.slane %v412, 2
        %v414 = vmax.f32 %v412, %v413
        %v415 = vrot.slane %v414, 1
        %v416 = vmax.f32 %v414, %v415
        %v417 = vrot.slane %v378, 4
        %v418 = vmax.f32 %v378, %v417
        %v419 = vrot.slane %v418, 2
        %v420 = vmax.f32 %v418, %v419
        %v421 = vrot.slane %v420, 1
        %v422 = vmax.f32 %v420, %v421
        %v423 = vrot.slane %v379, 4
        %v424 = vmax.f32 %v379, %v423
        %v425 = vrot.slane %v424, 2
        %v426 = vmax.f32 %v424, %v425
        %v427 = vrot.slane %v426, 1
        %v428 = vmax.f32 %v426, %v427
        %vm437 = vcmask 1041409
        %v438 = vsel %vm437, %v392, %v386
        %vm439 = vcmask 1042434
        %v440 = vsel %vm439, %v398, %v438
        %vm441 = vcmask 1043459
        %v442 = vsel %vm441, %v404, %v440
        %vm443 = vcmask 1044484
        %v444 = vsel %vm443, %v410, %v442
        %vm445 = vcmask 1045509
        %v446 = vsel %vm445, %v416, %v444
        %vm447 = vcmask 1046534
        %v448 = vsel %vm447, %v422, %v446
        %vm449 = vcmask 1047559
        %v450 = vsel %vm449, %v428, %v448
        %v452 = vmax.f32 %v380, %v450
        %453 = vst [vmem:[#allocation2] sm:$0xff] %v452
        %p454 = scmp.eq.s32.totalorder %s31, 2
        // Predicated region
        $region69: #{tpu_custom_call.1} parent=47 // pred_check
          %p455 = pneg %p454
        $region70: #{tpu_custom_call.1} parent=47 // pred_check_branch
          %457 = sbr.rel (%p455) target = $region72
        $region71: #{tpu_custom_call.1} parent=47 // pred_region
          %v458 = vld [vmem:[#allocation2] sm:$0xff]
          %v459 = vpack.c.bf16 %v458, %v458
          %v460 = vld [vmem:[#allocation6] sm:$0xf]
          %v461 = vld [vmem:[#allocation6 + $0x4] sm:$0xf]
          %v462 = vld [vmem:[#allocation6 + $0x8] sm:$0xf]
          %v463 = vld [vmem:[#allocation6 + $0xc] sm:$0xf]
          %v464 = vld [vmem:[#allocation6 + $0x10] sm:$0xf]
          %v465 = vld [vmem:[#allocation6 + $0x14] sm:$0xf]
          %v466 = vld [vmem:[#allocation6 + $0x18] sm:$0xf]
          %v467 = vld [vmem:[#allocation6 + $0x1c] sm:$0xf]
          %v468 = vld [vmem:[#allocation6 + $0x20] sm:$0xf]
          %v469 = vld [vmem:[#allocation6 + $0x24] sm:$0xf]
          %v470 = vld [vmem:[#allocation6 + $0x28] sm:$0xf]
          %v471 = vld [vmem:[#allocation6 + $0x2c] sm:$0xf]
          %v472 = vld [vmem:[#allocation6 + $0x30] sm:$0xf]
          %v473 = vld [vmem:[#allocation6 + $0x34] sm:$0xf]
          %v474 = vld [vmem:[#allocation6 + $0x38] sm:$0xf]
          %v475 = vld [vmem:[#allocation6 + $0x3c] sm:$0xf]
          %v476 = vld [vmem:[%s2] sm:$0x1]
          %v478 = vlaneseq
          %v479 = vshrl.u32 %v478, 7
          %v480 = vsub.s32 0, %v479
          %v481 = vrot.slane %v476, %v480
          %v499 = vunpack.c.l.b16 %v460
          %v500 = vunpack.c.l.b16 %v461
          %v501 = vunpack.c.l.b16 %v462
          %v502 = vunpack.c.l.b16 %v463
          %v503 = vunpack.c.l.b16 %v464
          %v504 = vunpack.c.l.b16 %v465
          %v505 = vunpack.c.l.b16 %v466
          %v506 = vunpack.c.l.b16 %v467
          %v507 = vunpack.c.l.b16 %v468
          %v508 = vunpack.c.l.b16 %v469
          %v509 = vunpack.c.l.b16 %v470
          %v510 = vunpack.c.l.b16 %v471
          %v511 = vunpack.c.l.b16 %v472
          %v512 = vunpack.c.l.b16 %v473
          %v513 = vunpack.c.l.b16 %v474
          %v514 = vunpack.c.l.b16 %v475
          %v515 = vpack.c.b16 %v500, %v499
          %v516 = vpack.c.b16 %v502, %v501
          %v517 = vpack.c.b16 %v504, %v503
          %v518 = vpack.c.b16 %v506, %v505
          %v519 = vpack.c.b16 %v508, %v507
          %v520 = vpack.c.b16 %v510, %v509
          %v521 = vpack.c.b16 %v512, %v511
          %v522 = vpack.c.b16 %v514, %v513
          %531 = vmatprep.subr.bf16.mxu0 0
          %532 = vmatpush1.bf16.msra.mxu0 %v515
          %533 = vmatprep.subr.bf16.mxu0 0
          %534 = vmatpush1.bf16.msra.mxu0 %v516
          %535 = vmatprep.subr.bf16.mxu0 0
          %536 = vmatpush1.bf16.msra.mxu0 %v517
          %537 = vmatprep.subr.bf16.mxu0 0
          %538 = vmatpush1.bf16.msra.mxu0 %v518
          %539 = vmatprep.subr.bf16.mxu0 0
          %540 = vmatpush1.bf16.msra.mxu0 %v519
          %541 = vmatprep.subr.bf16.mxu0 0
          %542 = vmatpush1.bf16.msra.mxu0 %v520
          %543 = vmatprep.subr.bf16.mxu0 0
          %544 = vmatpush1.bf16.msra.mxu0 %v521
          %545 = vmatprep.subr.bf16.mxu0 0
          %546 = vmatpush1.bf16.msra.mxu0 %v522
          %547 = vmatprep.subr.bf16.mxu0 0
          %548 = vmatpush1.bf16.msra.mxu0 0
          %549 = vmatprep.subr.bf16.mxu0 0
          %550 = vmatpush1.bf16.msra.mxu0 0
          %551 = vmatprep.subr.bf16.mxu0 0
          %552 = vmatpush1.bf16.msra.mxu0 0
          %553 = vmatprep.subr.bf16.mxu0 0
          %554 = vmatpush1.bf16.msra.mxu0 0
          %555 = vmatprep.subr.bf16.mxu0 0
          %556 = vmatpush1.bf16.msra.mxu0 0
          %557 = vmatprep.subr.bf16.mxu0 0
          %558 = vmatpush1.bf16.msra.mxu0 0
          %559 = vmatprep.subr.bf16.mxu0 0
          %560 = vmatpush1.bf16.msra.mxu0 0
          %561 = vmatprep.subr.bf16.mxu0 0
          %562 = vmatpush1.bf16.msra.mxu0 0
          %563 = vmatprep.mubr.bf16.mxu0 0
          %564 = vmatmul.mubr.bf16.gmra.mrb[0].mxu0 %v459
          %v565 = vpop.f32.mrb[0].mxu0
          %v566 = vadd.f32 %v481, %v565
          %v567 = vpop.f32.mrb[0].mxu0
          %v568 = vpop.f32.mrb[0].mxu0
          %v569 = vpop.f32.mrb[0].mxu0
          %570 = vdwg.mxu0
          %v571 = vmax.f32 %v566, 0.0
          %v572 = vpack.c.bf16 %v571, %v571
          %v573 = vld [vmem:[#allocation8] sm:$0xf]
          %v574 = vld [vmem:[#allocation8 + $0x4] sm:$0xf]
          %v575 = vld [vmem:[#allocation8 + $0x8] sm:$0xf]
          %v576 = vld [vmem:[#allocation8 + $0xc] sm:$0xf]
          %v577 = vld [vmem:[#allocation8 + $0x10] sm:$0xf]
          %v578 = vld [vmem:[#allocation8 + $0x14] sm:$0xf]
          %v579 = vld [vmem:[#allocation8 + $0x18] sm:$0xf]
          %v580 = vld [vmem:[#allocation8 + $0x1c] sm:$0xf]
          %v581 = vld [vmem:[#allocation8 + $0x20] sm:$0xf]
          %v582 = vld [vmem:[#allocation8 + $0x24] sm:$0xf]
          %v583 = vld [vmem:[#allocation8 + $0x28] sm:$0xf]
          %v584 = vld [vmem:[#allocation8 + $0x2c] sm:$0xf]
          %v585 = vld [vmem:[#allocation8 + $0x30] sm:$0xf]
          %v586 = vld [vmem:[#allocation8 + $0x34] sm:$0xf]
          %v587 = vld [vmem:[#allocation8 + $0x38] sm:$0xf]
          %v588 = vld [vmem:[#allocation8 + $0x3c] sm:$0xf]
          %v589 = vld [vmem:[%s4] sm:$0x1]
          %v591 = vlaneseq
          %v592 = vshrl.u32 %v591, 7
          %v593 = vsub.s32 0, %v592
          %v594 = vrot.slane %v589, %v593
          %v612 = vunpack.c.l.b16 %v573
          %v613 = vunpack.c.l.b16 %v574
          %v614 = vunpack.c.l.b16 %v575
          %v615 = vunpack.c.l.b16 %v576
          %v616 = vunpack.c.l.b16 %v577
          %v617 = vunpack.c.l.b16 %v578
          %v618 = vunpack.c.l.b16 %v579
          %v619 = vunpack.c.l.b16 %v580
          %v620 = vunpack.c.l.b16 %v581
          %v621 = vunpack.c.l.b16 %v582
          %v622 = vunpack.c.l.b16 %v583
          %v623 = vunpack.c.l.b16 %v584
          %v624 = vunpack.c.l.b16 %v585
          %v625 = vunpack.c.l.b16 %v586
          %v626 = vunpack.c.l.b16 %v587
          %v627 = vunpack.c.l.b16 %v588
          %v628 = vpack.c.b16 %v613, %v612
          %v629 = vpack.c.b16 %v615, %v614
          %v630 = vpack.c.b16 %v617, %v616
          %v631 = vpack.c.b16 %v619, %v618
          %v632 = vpack.c.b16 %v621, %v620
          %v633 = vpack.c.b16 %v623, %v622
          %v634 = vpack.c.b16 %v625, %v624
          %v635 = vpack.c.b16 %v627, %v626
          %644 = vmatprep.subr.bf16.mxu0 0
          %645 = vmatpush1.bf16.msra.mxu0 %v628
          %646 = vmatprep.subr.bf16.mxu0 0
          %647 = vmatpush1.bf16.msra.mxu0 %v629
          %648 = vmatprep.subr.bf16.mxu0 0
          %649 = vmatpush1.bf16.msra.mxu0 %v630
          %650 = vmatprep.subr.bf16.mxu0 0
          %651 = vmatpush1.bf16.msra.mxu0 %v631
          %652 = vmatprep.subr.bf16.mxu0 0
          %653 = vmatpush1.bf16.msra.mxu0 %v632
          %654 = vmatprep.subr.bf16.mxu0 0
          %655 = vmatpush1.bf16.msra.mxu0 %v633
          %656 = vmatprep.subr.bf16.mxu0 0
          %657 = vmatpush1.bf16.msra.mxu0 %v634
          %658 = vmatprep.subr.bf16.mxu0 0
          %659 = vmatpush1.bf16.msra.mxu0 %v635
          %660 = vmatprep.subr.bf16.mxu0 0
          %661 = vmatpush1.bf16.msra.mxu0 0
          %662 = vmatprep.subr.bf16.mxu0 0
          %663 = vmatpush1.bf16.msra.mxu0 0
          %664 = vmatprep.subr.bf16.mxu0 0
          %665 = vmatpush1.bf16.msra.mxu0 0
          %666 = vmatprep.subr.bf16.mxu0 0
          %667 = vmatpush1.bf16.msra.mxu0 0
          %668 = vmatprep.subr.bf16.mxu0 0
          %669 = vmatpush1.bf16.msra.mxu0 0
          %670 = vmatprep.subr.bf16.mxu0 0
          %671 = vmatpush1.bf16.msra.mxu0 0
          %672 = vmatprep.subr.bf16.mxu0 0
          %673 = vmatpush1.bf16.msra.mxu0 0
          %674 = vmatprep.subr.bf16.mxu0 0
          %675 = vmatpush1.bf16.msra.mxu0 0
          %676 = vmatprep.mubr.bf16.mxu0 0
          %677 = vmatmul.mubr.bf16.gmra.mrb[0].mxu0 %v572
          %v678 = vpop.f32.mrb[0].mxu0
          %v679 = vadd.f32 %v594, %v678
          %v680 = vpop.f32.mrb[0].mxu0
          %v681 = vpop.f32.mrb[0].mxu0
          %v682 = vpop.f32.mrb[0].mxu0
          %683 = vdwg.mxu0
          %v684 = vmax.f32 %v679, 0.0
          %v685 = vpack.c.bf16 %v684, %v684
          %v686 = vld [vmem:[#allocation9] sm:$0xf]
          %v687 = vld [vmem:[#allocation9 + $0x4] sm:$0xf]
          %v688 = vld [vmem:[#allocation9 + $0x8] sm:$0xf]
          %v689 = vld [vmem:[#allocation9 + $0xc] sm:$0xf]
          %v690 = vld [vmem:[#allocation9 + $0x10] sm:$0xf]
          %v691 = vld [vmem:[#allocation9 + $0x14] sm:$0xf]
          %v692 = vld [vmem:[#allocation9 + $0x18] sm:$0xf]
          %v693 = vld [vmem:[#allocation9 + $0x1c] sm:$0xf]
          %v694 = vld [vmem:[#allocation9 + $0x20] sm:$0xf]
          %v695 = vld [vmem:[#allocation9 + $0x24] sm:$0xf]
          %v696 = vld [vmem:[#allocation9 + $0x28] sm:$0xf]
          %v697 = vld [vmem:[#allocation9 + $0x2c] sm:$0xf]
          %v698 = vld [vmem:[#allocation9 + $0x30] sm:$0xf]
          %v699 = vld [vmem:[#allocation9 + $0x34] sm:$0xf]
          %v700 = vld [vmem:[#allocation9 + $0x38] sm:$0xf]
          %v701 = vld [vmem:[#allocation9 + $0x3c] sm:$0xf]
          %v702 = vld [vmem:[%s6] sm:$0x1]
          %v704 = vlaneseq
          %v705 = vshrl.u32 %v704, 7
          %v706 = vsub.s32 0, %v705
          %v707 = vrot.slane %v702, %v706
          %v725 = vunpack.c.l.b16 %v686
          %v726 = vunpack.c.l.b16 %v687
          %v727 = vunpack.c.l.b16 %v688
          %v728 = vunpack.c.l.b16 %v689
          %v729 = vunpack.c.l.b16 %v690
          %v730 = vunpack.c.l.b16 %v691
          %v731 = vunpack.c.l.b16 %v692
          %v732 = vunpack.c.l.b16 %v693
          %v733 = vunpack.c.l.b16 %v694
          %v734 = vunpack.c.l.b16 %v695
          %v735 = vunpack.c.l.b16 %v696
          %v736 = vunpack.c.l.b16 %v697
          %v737 = vunpack.c.l.b16 %v698
          %v738 = vunpack.c.l.b16 %v699
          %v739 = vunpack.c.l.b16 %v700
          %v740 = vunpack.c.l.b16 %v701
          %v741 = vpack.c.b16 %v726, %v725
          %v742 = vpack.c.b16 %v728, %v727
          %v743 = vpack.c.b16 %v730, %v729
          %v744 = vpack.c.b16 %v732, %v731
          %v745 = vpack.c.b16 %v734, %v733
          %v746 = vpack.c.b16 %v736, %v735
          %v747 = vpack.c.b16 %v738, %v737
          %v748 = vpack.c.b16 %v740, %v739
          %757 = vmatprep.subr.bf16.mxu0 0
          %758 = vmatpush1.bf16.msra.mxu0 %v741
          %759 = vmatprep.subr.bf16.mxu0 0
          %760 = vmatpush1.bf16.msra.mxu0 %v742
          %761 = vmatprep.subr.bf16.mxu0 0
          %762 = vmatpush1.bf16.msra.mxu0 %v743
          %763 = vmatprep.subr.bf16.mxu0 0
          %764 = vmatpush1.bf16.msra.mxu0 %v744
          %765 = vmatprep.subr.bf16.mxu0 0
          %766 = vmatpush1.bf16.msra.mxu0 %v745
          %767 = vmatprep.subr.bf16.mxu0 0
          %768 = vmatpush1.bf16.msra.mxu0 %v746
          %769 = vmatprep.subr.bf16.mxu0 0
          %770 = vmatpush1.bf16.msra.mxu0 %v747
          %771 = vmatprep.subr.bf16.mxu0 0
          %772 = vmatpush1.bf16.msra.mxu0 %v748
          %773 = vmatprep.subr.bf16.mxu0 0
          %774 = vmatpush1.bf16.msra.mxu0 0
          %775 = vmatprep.subr.bf16.mxu0 0
          %776 = vmatpush1.bf16.msra.mxu0 0
          %777 = vmatprep.subr.bf16.mxu0 0
          %778 = vmatpush1.bf16.msra.mxu0 0
          %779 = vmatprep.subr.bf16.mxu0 0
          %780 = vmatpush1.bf16.msra.mxu0 0
          %781 = vmatprep.subr.bf16.mxu0 0
          %782 = vmatpush1.bf16.msra.mxu0 0
          %783 = vmatprep.subr.bf16.mxu0 0
          %784 = vmatpush1.bf16.msra.mxu0 0
          %785 = vmatprep.subr.bf16.mxu0 0
          %786 = vmatpush1.bf16.msra.mxu0 0
          %787 = vmatprep.subr.bf16.mxu0 0
          %788 = vmatpush1.bf16.msra.mxu0 0
          %789 = vmatprep.mubr.bf16.mxu0 0
          %790 = vmatmul.mubr.bf16.gmra.mrb[0].mxu0 %v685
          %v791 = vpop.f32.mrb[0].mxu0
          %v792 = vadd.f32 %v707, %v791
          %v793 = vpop.f32.mrb[0].mxu0
          %v794 = vpop.f32.mrb[0].mxu0
          %v795 = vpop.f32.mrb[0].mxu0
          %796 = vdwg.mxu0
          %v797 = vmax.f32 %v792, 0.0
          %798 = vst [vmem:[%s356] sm:$0xff] %v797
        $region72: #{tpu_custom_call.1} parent=47 // pred_fallthru
          _
        %s799 = sand.u32 %s200, 1
        %s800 = scalar_lea.sflag [#allocation5], %s799
        %s801 = sand.u32 %s200, 1
        %s802 = smul.addr %s801, 8
        %s803 = scalar_lea.vmem [#allocation11], %s802
        // Predicated region
        $region73: #{tpu_custom_call.1} parent=47 // pred_check
          %p804 = pneg %p210
        $region74: #{tpu_custom_call.1} parent=47 // pred_check_branch
          %806 = sbr.rel (%p804) target = $region76
        $region75: #{tpu_custom_call.1} parent=47 // pred_region
          %s808 = ssub.s32 128, 128
          %809 = vsyncadd %s800, %s808
          %s810 = smul.addr %s30, 128
          %s811 = scalar_lea.hbm %s7, %s810
          %s813 = sshll.u32 %s803, 4
          %s814 = int_to_ptr.vmem [resolvable:$true] %s813
          %816 = dma.vmem_to_hbm [thread:$0]  %s814, 128, %s811, %s800
        $region76: #{tpu_custom_call.1} parent=47 // pred_fallthru
          _
      $region48: #{tpu_custom_call.1} parent=5 // pred_fallthru
        _
      %p817 = scmp.le.s32.totalorder 2, %s21
      // Predicated region
      $region77: #{tpu_custom_call.1} parent=5 // pred_check
        %p818 = pneg %p817
      $region78: #{tpu_custom_call.1} parent=5 // pred_check_branch
        %820 = sbr.rel (%p818) target = $region80
      $region79: #{tpu_custom_call.1} parent=5 // pred_region
        %s821 = ssub.s32 %s21, 2
        // Predicated region
        $region81: #{tpu_custom_call.1} parent=79 // pred_check
          %p822 = pneg %p216
        $region82: #{tpu_custom_call.1} parent=79 // pred_check_branch
          %824 = sbr.rel (%p822) target = $region84
        $region83: #{tpu_custom_call.1} parent=79 // pred_region
          %s825 = sand.u32 %s201, 1
          %s826 = scalar_lea.sflag [#allocation5], %s825
          %s827 = sand.u32 %s201, 1
          %s828 = smul.addr %s827, 8
          %s829 = scalar_lea.vmem [#allocation11], %s828
          %830 = dma.done %s826, 128
        $region84: #{tpu_custom_call.1} parent=79 // pred_fallthru
          _
      $region80: #{tpu_custom_call.1} parent=5 // pred_fallthru
        _
    $region6: #{tpu_custom_call.1} parent=1 // loop_footer
      %s25 = sadd.s32 1, %s21
    $region7: #{tpu_custom_call.1} parent=1 // loop_footer_branch
      %20 = sbr.rel target = $region3
    $region8: #{tpu_custom_call.1} parent=1 // loop_exit
      _
    %831 = vsyncpa [#allocation4], 1
    %s832 = scalar_lea.sflag [#allocation4], 1
    %833 = vsyncpa %s832, 1
    %834 = vsyncpa [#allocation7], 1
    %835 = vsyncpa [#allocation10], 1
    %836 = vsyncpa [#allocation5], 1
    %s837 = scalar_lea.sflag [#allocation5], 1
    %838 = vsyncpa %s837, 1

</llo_original>
